<compile_context>
chip_gen: v5e
topology: v5e:2x2
jax: 0.10.0
libtpu: 0.0.40
codegen_flags: <defaults>
</compile_context>

<pallas_src>
import functools
import math

import jax
import jax.numpy as jnp
from jax import lax
from jax.experimental import pallas as pl
from jax.experimental.pallas import tpu as pltpu

LANES = 128
_LOG_CLAMP = -100.0              # F.binary_cross_entropy clamps log terms at -100
_BLOCK_BYTES = 8 << 20           # ~8 MiB of VMEM per input block
_VMEM_LIMIT_BYTES = 40 << 20     # 2 inputs x 2 pipeline buffers x 8 MiB = 32 MiB, + headroom


# --------------------------------------------------------------------------- helpers
def _cdiv(a, b):
    return (a + b - 1) // b


def _round_up(a, b):
    return _cdiv(a, b) * b


def _fit_block(extent, unit, cap):
    """Block size along one axis: the full extent if it fits under `cap`, else the largest
    multiple of `unit` that does (at least `unit`).  A full extent is always legal for the
    last two block dims; multiples of `unit` keep the (8,128)/dtype-packing rules."""
    if extent <= cap:
        return int(extent)
    return int(max(unit, (cap // unit) * unit))


def _alpha_array(alpha):
    # alpha is a runtime SMEM scalar -> a new alpha value never forces a Mosaic recompile.
    return jnp.asarray(alpha, dtype=jnp.float32).reshape((1,))


def _compiler_params(semantics):
    return pltpu.CompilerParams(dimension_semantics=semantics,
                                vmem_limit_bytes=_VMEM_LIMIT_BYTES)


_SMEM_SPEC = pl.BlockSpec(memory_space=pltpu.MemorySpace.SMEM)


def _weighted_bce(x, t, alpha):
    """Elementwise weighted BCE in f32.

    IMPORTANT: the logs are clamped at -100 BEFORE being multiplied by the (possibly zero)
    weights, exactly like F.binary_cross_entropy -- otherwise 0 * (-inf) = NaN.
    """
    x = x.astype(jnp.float32)
    t = t.astype(jnp.float32)
    one_m_t = 1.0 - t
    log_x = jnp.maximum(jnp.log(x), _LOG_CLAMP)
    log_1mx = jnp.maximum(jnp.log1p(-x), _LOG_CLAMP)
    bce = -(t * log_x + one_m_t * log_1mx)
    # TODO(synk): if targets are guaranteed binary {0,1}, a single-log variant would halve the
    # EUP work (matters on v5e); with fractional targets it would change the result, so skipped.
    return (alpha * t + (2.0 - alpha) * one_m_t) * bce


# --------------------------------------------------------------------------- kernels
def _wbce_partial_sum_kernel(alpha_ref, x_ref, t_ref, psum_ref, *, rows, block_rows):
    """Full-mean path: one independent (1,1,C) column-sum partial per grid step.

    The grid is fully "parallel" (shards across both v7x TensorCores).  The tail of a ragged
    last block is masked in-kernel instead of materializing padded copies of the inputs.
    """
    i = pl.program_id(0)
    loss = _weighted_bce(x_ref[...], t_ref[...], alpha_ref[0])       # (block_rows, C) f32
    rem = rows - i * block_rows                                      # rows still in-bounds
    ridx = lax.broadcasted_iota(jnp.int32, loss.shape, 0)
    loss = jnp.where(ridx < rem, loss, 0.0)                          # select also kills OOB NaNs
    psum_ref[...] = jnp.sum(loss, axis=0, keepdims=True)[None, :, :]  # (1, 1, C)


def _wbce_lastdim_kernel(alpha_ref, x_ref, t_ref, o_ref, *, d, d_block):
    """Mean over the trailing axis: (pre, D) blocks with D on the lane axis (no 1->128 pad).

    Grid axis 1 is the reduction over D ("arbitrary"); the f32 output block stays resident in
    VMEM across it, so we accumulate directly into o_ref (no scratch buffer).
    """
    k = pl.program_id(1)

    @pl.when(k == 0)
    def _init():
        o_ref[...] = jnp.zeros_like(o_ref)

    loss = _weighted_bce(x_ref[...], t_ref[...], alpha_ref[0])       # (pre_b, d_b) f32
    rem = d - k * d_block
    didx = lax.broadcasted_iota(jnp.int32, loss.shape, 1)
    loss = jnp.where(didx < rem, loss, 0.0)                          # mask ragged tail of D
    o_ref[...] += jnp.sum(loss, axis=1, keepdims=True)               # lane reduce -> (pre_b, 1)

    @pl.when(k == pl.num_programs(1) - 1)
    def _finalize():
        o_ref[...] = o_ref[...] * (1.0 / d)                          # divide by the TRUE D


def _wbce_middledim_kernel(alpha_ref, x_ref, t_ref, o_ref, *, d, d_block):
    """Mean over a middle axis: (pre, D, post) blocks, reduction grid axis last ("arbitrary").

    Accumulates directly into the resident f32 output block (no acc scratch); only the D axis
    needs masking (pre/post out-of-bounds regions never reach an in-bounds output element).
    """
    k = pl.program_id(2)

    @pl.when(k == 0)
    def _init():
        o_ref[...] = jnp.zeros_like(o_ref)

    loss = _weighted_bce(x_ref[...], t_ref[...], alpha_ref[0])       # (pre_b, d_b, post_b) f32
    rem = d - k * d_block
    didx = lax.broadcasted_iota(jnp.int32, loss.shape, 1)
    loss = jnp.where(didx < rem, loss, 0.0)
    o_ref[...] += jnp.sum(loss, axis=1)                              # (pre_b, post_b)

    @pl.when(k == pl.num_programs(2) - 1)
    def _finalize():
        o_ref[...] = o_ref[...] * (1.0 / d)                          # divide by the TRUE D


# --------------------------------------------------------------------------- wrappers
def _wbce_full_mean(x, t, alpha):
    total = x.size
    shape = x.shape
    itemsize = max(x.dtype.itemsize, t.dtype.itemsize)

    # Free (contiguous) 2-D collapse: prefer a lane-dense (R, 128) view; if the element count
    # is not 128-aligned fall back to (prod(:-1), last_dim) so no padded HBM copy is ever made.
    if total % LANES == 0:
        C = LANES
    else:
        C = shape[-1] if len(shape) else 1
        # TODO(synk): a 1-D input with a non-128-multiple length lands here as a single block.
    R = total // C
    x2 = x.reshape(R, C)
    t2 = t.reshape(R, C)

    row_vmem = _round_up(C, LANES) * itemsize                 # VMEM bytes per block row
    block_rows = _fit_block(R, 32, max(32, _BLOCK_BYTES // row_vmem))
    nblk = _cdiv(R, block_rows)

    cost = pl.CostEstimate(
        flops=10 * total,
        transcendentals=2 * total,
        bytes_accessed=total * (x.dtype.itemsize + t.dtype.itemsize) + nblk * C * 4)

    partials = pl.pallas_call(
        functools.partial(_wbce_partial_sum_kernel, rows=R, block_rows=block_rows),
        out_shape=jax.ShapeDtypeStruct((nblk, 1, C), jnp.float32),
        grid=(nblk,),
        in_specs=[_SMEM_SPEC,
                  pl.BlockSpec((block_rows, C), lambda i: (i, 0)),
                  pl.BlockSpec((block_rows, C), lambda i: (i, 0))],
        out_specs=pl.BlockSpec((1, 1, C), lambda i: (i, 0, 0)),
        compiler_params=_compiler_params(("parallel",)),
        cost_estimate=cost,
    )(_alpha_array(alpha), x2, t2)

    # Tiny finish on the (nblk, 1, C) partials; divide by the TRUE element count.
    return jnp.sum(partials) / jnp.float32(total)


def _wbce_mean_over_dim(x, t, alpha, dim):
    shape = x.shape
    ndim = len(shape)
    dim = dim % ndim
    pre = math.prod(shape[:dim])
    D = shape[dim]
    post = math.prod(shape[dim + 1:])
    out_shape = shape[:dim] + shape[dim + 1:]
    itemsize = max(x.dtype.itemsize, t.dtype.itemsize)
    in_bytes = x.dtype.itemsize + t.dtype.itemsize

    if post == 1:
        # ---- trailing-axis reduction: 2-D (pre, D), D on lanes (contiguous, never padded).
        x2 = x.reshape(pre, D)
        t2 = t.reshape(pre, D)
        d_block = _fit_block(D, LANES, max(LANES, _BLOCK_BYTES // (32 * itemsize)))
        row_vmem = _round_up(d_block, LANES) * itemsize
        pre_block = _fit_block(pre, 32, max(32, _BLOCK_BYTES // row_vmem))
        grid = (_cdiv(pre, pre_block), _cdiv(D, d_block))

        cost = pl.CostEstimate(
            flops=10 * pre * D, transcendentals=2 * pre * D,
            bytes_accessed=pre * D * in_bytes + pre * 4)

        out = pl.pallas_call(
            functools.partial(_wbce_lastdim_kernel, d=D, d_block=d_block),
            out_shape=jax.ShapeDtypeStruct((pre, 1), jnp.float32),
            grid=grid,
            in_specs=[_SMEM_SPEC,
                      pl.BlockSpec((pre_block, d_block), lambda i, k: (i, k)),
                      pl.BlockSpec((pre_block, d_block), lambda i, k: (i, k))],
            out_specs=pl.BlockSpec((pre_block, 1), lambda i, k: (i, 0)),
            compiler_params=_compiler_params(("parallel", "arbitrary")),
            cost_estimate=cost,
        )(_alpha_array(alpha), x2, t2)
        # TODO(synk): for very large `pre` a lane-dense (transposed) output staging would make
        # the (pre, 1) writeback DMA fully contiguous; output traffic is D x smaller than the
        # input so the (pre, 1) layout is the robust choice here.
        return out.reshape(out_shape)

    # ---- middle-axis reduction: 3-D (pre, D, post); post stays unpadded on the lane axis.
    x3 = x.reshape(pre, D, post)
    t3 = t.reshape(pre, D, post)
    min_pre = min(pre, 8)
    min_d = min(D, 32)
    post_block = _fit_block(post, LANES,
                            max(LANES, _BLOCK_BYTES // (min_pre * min_d * itemsize)))
    row_vmem = _round_up(post_block, LANES) * itemsize
    d_block = _fit_block(D, 32, max(min_d, _BLOCK_BYTES // (min_pre * row_vmem)))
    pre_block = _fit_block(pre, 8, max(min_pre, _BLOCK_BYTES // (d_block * row_vmem)))
    grid = (_cdiv(pre, pre_block), _cdiv(post, post_block), _cdiv(D, d_block))

    elems = pre * D * post
    cost = pl.CostEstimate(
        flops=10 * elems, transcendentals=2 * elems,
        bytes_accessed=elems * in_bytes + pre * post * 4)

    out = pl.pallas_call(
        functools.partial(_wbce_middledim_kernel, d=D, d_block=d_block),
        out_shape=jax.ShapeDtypeStruct((pre, post), jnp.float32),
        grid=grid,
        in_specs=[_SMEM_SPEC,
                  pl.BlockSpec((pre_block, d_block, post_block), lambda i, j, k: (i, k, j)),
                  pl.BlockSpec((pre_block, d_block, post_block), lambda i, j, k: (i, k, j))],
        out_specs=pl.BlockSpec((pre_block, post_block), lambda i, j, k: (i, j)),
        compiler_params=_compiler_params(("parallel", "parallel", "arbitrary")),
        cost_estimate=cost,
    )(_alpha_array(alpha), x3, t3)
    return out.reshape(out_shape)


def weighted_bce_loss(x, target, alpha, dim=None):
    """Pallas TPU implementation of weightedBCELoss.forward.

    NOTE: the PyTorch module uses `if dim:`, so dim=None AND dim=0 both take the full-mean
    branch.  This quirk is reproduced on purpose -- do NOT "fix" it, or this diverges from
    the reference model.
    """
    if dim:
        if isinstance(dim, (tuple, list)):
            # TODO(synk): tuple-valued `dim` (multi-axis mean) is not fused; only int dims.
            raise NotImplementedError("weighted_bce_loss: only int `dim` is supported")
        return _wbce_mean_over_dim(x, target, alpha, int(dim))
    return _wbce_full_mean(x, target, alpha)


# --------------------------------------------------------------------------- reference & test
def _reference(x, t, alpha, dim=None):
    x = x.astype(jnp.float32)
    t = t.astype(jnp.float32)
    bce = -(t * jnp.maximum(jnp.log(x), -100.0)
            + (1.0 - t) * jnp.maximum(jnp.log1p(-x), -100.0))
    loss = alpha * t * bce + (2.0 - alpha) * (1.0 - t) * bce
    return jnp.mean(loss, axis=dim) if dim else jnp.mean(loss)


if __name__ == "__main__":
    key = jax.random.PRNGKey(0)
    kx, kt, kx2, kt2 = jax.random.split(key, 4)

    B, C, H, W = 2, 4, 16, 16          # NCHW, like the PyTorch module's inputs
    alpha = 1.5

    # input must be a probability in (0, 1); target is a {0, 1} float mask.
    x = jax.nn.sigmoid(jax.random.normal(kx, (B, C, H, W), dtype=jnp.float32))
    t = jax.random.bernoulli(kt, 0.3, (B, C, H, W)).astype(jnp.float32)

    # full mean (dim=None); dim=0 is falsy in the PyTorch module so it also gives the full mean
    out = jax.block_until_ready(weighted_bce_loss(x, t, alpha))
    ref = _reference(x, t, alpha)
    assert jnp.allclose(out, ref, rtol=1e-5, atol=1e-6), (out, ref)
    out0 = jax.block_until_ready(weighted_bce_loss(x, t, alpha, dim=0))
    assert jnp.allclose(out0, ref, rtol=1e-5, atol=1e-6), (out0, ref)

    # fused mean over middle axes (dim=1, dim=2) and the trailing axis (dim=3 / dim=-1)
    for d in (1, 2, 3, -1):
        out_d = jax.block_until_ready(weighted_bce_loss(x, t, alpha, dim=d))
        ref_d = _reference(x, t, alpha, dim=d)
        assert out_d.shape == ref_d.shape, (d, out_d.shape, ref_d.shape)
        assert jnp.allclose(out_d, ref_d, rtol=1e-5, atol=1e-5), d

    # non-128-divisible element count exercises the in-kernel tail masking (no jnp.pad copies)
    xs = jax.nn.sigmoid(jax.random.normal(kx2, (3, 5, 7, 11), dtype=jnp.float32))
    ts = jax.random.bernoulli(kt2, 0.5, (3, 5, 7, 11)).astype(jnp.float32)
    outs = jax.block_until_ready(weighted_bce_loss(xs, ts, alpha))
    refs = _reference(xs, ts, alpha)
    assert jnp.allclose(outs, refs, rtol=1e-5, atol=1e-6), (outs, refs)
    outs2 = jax.block_until_ready(weighted_bce_loss(xs, ts, alpha, dim=2))
    refs2 = _reference(xs, ts, alpha, dim=2)
    assert jnp.allclose(outs2, refs2, rtol=1e-5, atol=1e-5)

    # bf16 probabilities/targets halve HBM bytes; the kernel upcasts to f32 internally
    xb = x.astype(jnp.bfloat16)
    tb = t.astype(jnp.bfloat16)
    outb = jax.block_until_ready(weighted_bce_loss(xb, tb, alpha))
    refb = _reference(xb, tb, alpha)
    assert jnp.allclose(outb, refb, rtol=1e-4, atol=1e-5), (outb, refb)
    outb3 = jax.block_until_ready(weighted_bce_loss(xb, tb, alpha, dim=3))
    refb3 = _reference(xb, tb, alpha, dim=3)
    assert jnp.allclose(outb3, refb3, rtol=1e-4, atol=1e-4)

    print("KERNEL_OK")
</pallas_src>

<mosaic_0001>
module attributes {stable_mosaic.version = 11 : i64} {
  func.func @_wbce_partial_sum_kernel(%arg0: i32, %arg1: memref<1xf32, #tpu.memory_space<smem>>, %arg2: memref<16x128xf32, #tpu.memory_space<vmem>>, %arg3: memref<16x128xf32, #tpu.memory_space<vmem>>, %arg4: memref<1x1x128xf32, #tpu.memory_space<vmem>>) attributes {dimension_semantics = [#tpu.dimension_semantics<parallel>], iteration_bounds = array<i64: 1>, scalar_prefetch = 0 : i64, scratch_operands = 0 : i64, tpu.core_type = #tpu.core_type<tc>, window_params = [{transform_indices = @transform_0, window_bounds = array<i64: 1>}, {transform_indices = @transform_1, window_bounds = array<i64: 16, 128>}, {transform_indices = @transform_2, window_bounds = array<i64: 16, 128>}, {transform_indices = @transform_3, window_bounds = array<i64: 1, 1, 128>}]} {
    %c0 = arith.constant 0 : index
    %c0_0 = arith.constant 0 : index
    %0 = vector.load %arg2[%c0, %c0_0] : memref<16x128xf32, #tpu.memory_space<vmem>>, vector<16x128xf32>
    %c0_1 = arith.constant 0 : index
    %c0_2 = arith.constant 0 : index
    %1 = vector.load %arg3[%c0_1, %c0_2] : memref<16x128xf32, #tpu.memory_space<vmem>>, vector<16x128xf32>
    %c0_3 = arith.constant 0 : index
    %2 = memref.load %arg1[%c0_3] : memref<1xf32, #tpu.memory_space<smem>>
    %cst = arith.constant 1.000000e+00 : f32
    %3 = vector.broadcast %cst : f32 to vector<16x128xf32>
    %4 = arith.subf %3, %1 : vector<16x128xf32>
    %5 = math.log %0 : vector<16x128xf32>
    %cst_4 = arith.constant -1.000000e+02 : f32
    %6 = vector.broadcast %cst_4 : f32 to vector<16x128xf32>
    %7 = arith.maximumf %5, %6 : vector<16x128xf32>
    %cst_5 = arith.constant 0.000000e+00 : f32
    %8 = vector.broadcast %cst_5 : f32 to vector<16x128xf32>
    %9 = arith.subf %8, %0 : vector<16x128xf32>
    %10 = math.log1p %9 : vector<16x128xf32>
    %cst_6 = arith.constant -1.000000e+02 : f32
    %11 = vector.broadcast %cst_6 : f32 to vector<16x128xf32>
    %12 = arith.maximumf %10, %11 : vector<16x128xf32>
    %13 = arith.mulf %1, %7 : vector<16x128xf32>
    %14 = arith.mulf %4, %12 : vector<16x128xf32>
    %15 = arith.addf %13, %14 : vector<16x128xf32>
    %cst_7 = arith.constant 0.000000e+00 : f32
    %16 = vector.broadcast %cst_7 : f32 to vector<16x128xf32>
    %17 = arith.subf %16, %15 : vector<16x128xf32>
    %18 = vector.broadcast %2 : f32 to vector<16x128xf32>
    %19 = arith.mulf %18, %1 : vector<16x128xf32>
    %cst_8 = arith.constant 2.000000e+00 : f32
    %20 = arith.subf %cst_8, %2 : f32
    %21 = vector.broadcast %20 : f32 to vector<16x128xf32>
    %22 = arith.mulf %21, %4 : vector<16x128xf32>
    %23 = arith.addf %19, %22 : vector<16x128xf32>
    %24 = arith.mulf %23, %17 : vector<16x128xf32>
    %c16_i32 = arith.constant 16 : i32
    %25 = arith.muli %arg0, %c16_i32 : i32
    %c16_i32_9 = arith.constant 16 : i32
    %26 = arith.subi %c16_i32_9, %25 : i32
    %27 = tpu.iota {dimensions = array<i32: 0>} : vector<16x128xi32>
    %28 = vector.broadcast %26 : i32 to vector<16x128xi32>
    %29 = arith.cmpi slt, %27, %28 : vector<16x128xi32>
    %cst_10 = arith.constant 0.000000e+00 : f32
    %30 = vector.broadcast %cst_10 : f32 to vector<16x128xf32>
    %31 = arith.select %29, %24, %30 : vector<16x128xi1>, vector<16x128xf32>
    %cst_11 = arith.constant dense<0.000000e+00> : vector<128xf32>
    %32 = vector.multi_reduction <add>, %31, %cst_11 [0] : vector<16x128xf32> to vector<128xf32>
    %33 = vector.shape_cast %32 : vector<128xf32> to vector<1x128xf32>
    %34 = vector.shape_cast %33 : vector<1x128xf32> to vector<1x1x128xf32>
    %c0_12 = arith.constant 0 : index
    %c0_13 = arith.constant 0 : index
    %c0_14 = arith.constant 0 : index
    %35 = vector.load %arg4[%c0_12, %c0_13, %c0_14] : memref<1x1x128xf32, #tpu.memory_space<vmem>>, vector<1x1x128xf32>
    tpu.vector_store %arg4[%c0_12, %c0_13, %c0_14], %34 {strides = array<i32>} : memref<1x1x128xf32, #tpu.memory_space<vmem>>, vector<1x1x128xf32>,
    return
  }
  func.func @transform_0(%arg0: i32) -> i32 {
    %c0_i32 = arith.constant 0 : i32
    %c0_i32_0 = arith.constant 0 : i32
    return %c0_i32 : i32
  }
  func.func @transform_1(%arg0: i32) -> (i32, i32) {
    %c0_i32 = arith.constant 0 : i32
    %c0_i32_0 = arith.constant 0 : i32
    return %arg0, %c0_i32 : i32, i32
  }
  func.func @transform_2(%arg0: i32) -> (i32, i32) {
    %c0_i32 = arith.constant 0 : i32
    %c0_i32_0 = arith.constant 0 : i32
    return %arg0, %c0_i32 : i32, i32
  }
  func.func @transform_3(%arg0: i32) -> (i32, i32, i32) {
    %c0_i32 = arith.constant 0 : i32
    %c0_i32_0 = arith.constant 0 : i32
    %c0_i32_1 = arith.constant 0 : i32
    return %arg0, %c0_i32, %c0_i32_0 : i32, i32, i32
  }
}

</mosaic_0001>

<llo_original>
// kernel: tpu_custom_call.1
$region0: #{tpu_custom_call.1}
  #allocation0 [shape = 'u32[]', space=smem, size = 0x4, offset = 0x4, fixed_abs, tag = 'smem constant byte address 0x4 - core index']
  #allocation1 [shape = 'u32[72,128]{1,0:T(1,128)}', space=vmem, size = 0x9000, scoped, tag = 'internal scratch']
  #allocation2 [shape = 'f32[1]{0:T(128)S(6)}', space=smem, size = 0x200, scoped, tag = 'scoped memory for tpu_custom_call.1']
  %s0 = inlined_call_operand.<no memory space> [shape: f32[1], index: 0, kind: input, shape index: {}]
  %s1 = inlined_call_operand.hbm [shape: f32[16,128], index: 1, kind: input, shape index: {}]
  %s2 = inlined_call_operand.hbm [shape: f32[16,128], index: 2, kind: input, shape index: {}]
  %s3 = inlined_call_operand.hbm [shape: f32[1,1,128], index: 3, kind: output, shape index: {}]
  %s4 = sld [smem:[#allocation0]]
  $region30: #{tpu_custom_call.1} parent=0
    _
  %s6 = ssub.s32 1, %s4
  %s7 = scalar_select 0, %s6, %s4
  %8 = sst [smem:[#allocation2]] %s0
  $region1: #{tpu_custom_call.1} parent=0
    #allocation3 [shape = 'u8[8192]{0}', space=vmem, size = 0x2000, scoped, tag = 'input window, operand 1, single buffered']
    #allocation4 [shape = 's32[1]{0}', space=sflag, size = 0x4, scoped, tag = 'scoped memory for tpu_custom_call.1']
    #allocation5 [shape = 's32[1]{0}', space=sflag, size = 0x4, scoped, tag = 'scoped memory for tpu_custom_call.1']
    #allocation6 [shape = 'u8[8192]{0}', space=vmem, size = 0x2000, scoped, tag = 'input window, operand 2, single buffered']
    #allocation7 [shape = 's32[1]{0}', space=sflag, size = 0x4, scoped, tag = 'scoped memory for tpu_custom_call.1']
    #allocation8 [shape = 'u8[512]{0}', space=vmem, size = 0x400, scoped, tag = 'output window, operand 0, single buffered']
    %9 = vsyncpa [#allocation4], 0
    %10 = vsyncpa [#allocation7], 0
    %11 = vsyncpa [#allocation5], 0
    // Predicated region
    $region2: #{tpu_custom_call.1} parent=1 // pred_check
      _
    $region3: #{tpu_custom_call.1} parent=1 // pred_check_branch
      %13 = sbr.rel (0) target = $region5
    $region4: #{tpu_custom_call.1} parent=1 // pred_region
      _
    $region5: #{tpu_custom_call.1} parent=1 // pred_fallthru
      _
    // Predicated region
    $region6: #{tpu_custom_call.1} parent=1 // pred_check
      _
    $region7: #{tpu_custom_call.1} parent=1 // pred_check_branch
      %15 = sbr.rel (0) target = $region9
    $region8: #{tpu_custom_call.1} parent=1 // pred_region
      %17 = vsyncadd [#allocation4], 0
      %s18 = sshll.u32 %s1, 4
      %s19 = int_to_ptr.hbm [resolvable:$true] %s18
      %s20 = sshll.u32 [#allocation3], 4
      %s21 = int_to_ptr.vmem [resolvable:$true] %s20
      %26 = dma.hbm_to_vmem [thread:$0]  %s19, 256, %s21, [#allocation4], 128, 128, 8
    $region9: #{tpu_custom_call.1} parent=1 // pred_fallthru
      _
    // Predicated region
    $region10: #{tpu_custom_call.1} parent=1 // pred_check
      _
    $region11: #{tpu_custom_call.1} parent=1 // pred_check_branch
      %28 = sbr.rel (0) target = $region13
    $region12: #{tpu_custom_call.1} parent=1 // pred_region
      %30 = vsyncadd [#allocation7], 0
      %s31 = sshll.u32 %s2, 4
      %s32 = int_to_ptr.hbm [resolvable:$true] %s31
      %s33 = sshll.u32 [#allocation6], 4
      %s34 = int_to_ptr.vmem [resolvable:$true] %s33
      %39 = dma.hbm_to_vmem [thread:$0]  %s32, 256, %s34, [#allocation7], 128, 128, 8
    $region13: #{tpu_custom_call.1} parent=1 // pred_fallthru
      _
    // Predicated region
    $region14: #{tpu_custom_call.1} parent=1 // pred_check
      _
    $region15: #{tpu_custom_call.1} parent=1 // pred_check_branch
      %41 = sbr.rel (0) target = $region17
    $region16: #{tpu_custom_call.1} parent=1 // pred_region
      %43 = dma.done [#allocation4], 256
    $region17: #{tpu_custom_call.1} parent=1 // pred_fallthru
      _
    // Predicated region
    $region18: #{tpu_custom_call.1} parent=1 // pred_check
      _
    $region19: #{tpu_custom_call.1} parent=1 // pred_check_branch
      %45 = sbr.rel (0) target = $region21
    $region20: #{tpu_custom_call.1} parent=1 // pred_region
      %47 = dma.done [#allocation7], 256
    $region21: #{tpu_custom_call.1} parent=1 // pred_fallthru
      _
    %v48 = vld [vmem:[#allocation3] sm:$0xff]
    %v49 = vld [vmem:[#allocation3 + $0x8] sm:$0xff]
    %v50 = vld [vmem:[#allocation6] sm:$0xff]
    %v51 = vld [vmem:[#allocation6 + $0x8] sm:$0xff]
    %s52 = sld [smem:[#allocation2]]
    %v53 = vsub.f32 1.0, %v50
    %v54 = vsub.f32 1.0, %v51
    %v55 = vlog2.pop %v48
    %v56 = vmul.f32 %v55, 0.6931472
    %v57 = vlog2.pop %v49
    %v58 = vmul.f32 %v57, 0.6931472
    %v59 = vmax.f32 %v56, -100.0
    %v60 = vmax.f32 %v58, -100.0
    %v61 = vsub.f32 0.0, %v48
    %v62 = vsub.f32 0.0, %v49
    %v63 = vadd.f32 %v61, 1.0
    %v64 = vlog2.pop %v63
    %v65 = vmul.f32 %v64, 0.6931472
    %v66 = vmul.f32 -0.5, %v61
    %v67 = vadd.f32 %v66, 1.0
    %v68 = vmul.f32 %v67, %v61
    %v69 = vand.u32 2147483647, %v61
    %vm70 = vcmp.lt.f32.partialorder %v69, 0.0004427343
    %v71 = vsel %vm70, %v68, %v65
    %v72 = vadd.f32 %v62, 1.0
    %v73 = vlog2.pop %v72
    %v74 = vmul.f32 %v73, 0.6931472
    %v75 = vmul.f32 -0.5, %v62
    %v76 = vadd.f32 %v75, 1.0
    %v77 = vmul.f32 %v76, %v62
    %v78 = vand.u32 2147483647, %v62
    %vm79 = vcmp.lt.f32.partialorder %v78, 0.0004427343
    %v80 = vsel %vm79, %v77, %v74
    %v81 = vmax.f32 %v71, -100.0
    %v82 = vmax.f32 %v80, -100.0
    %v83 = vmul.f32 %v50, %v59
    %v84 = vmul.f32 %v51, %v60
    %v85 = vmul.f32 %v53, %v81
    %v86 = vmul.f32 %v54, %v82
    %v87 = vadd.f32 %v83, %v85
    %v88 = vadd.f32 %v84, %v86
    %v89 = vsub.f32 0.0, %v87
    %v90 = vsub.f32 0.0, %v88
    %v91 = vstv %s52
    %v92 = vmul.f32 %v91, %v50
    %v93 = vmul.f32 %v91, %v51
    %s94 = ssub.f32 2.0, %s52
    %v95 = vstv %s94
    %v96 = vmul.f32 %v95, %v53
    %v97 = vmul.f32 %v95, %v54
    %v98 = vadd.f32 %v92, %v96
    %v99 = vadd.f32 %v93, %v97
    %v100 = vmul.f32 %v98, %v89
    %v101 = vmul.f32 %v99, %v90
    %s102 = smul.u32 0, 16
    %s103 = ssub.s32 16, %s102
    %v104 = vlaneseq
    %v105 = vshrl.u32 %v104, 7
    %v106 = vadd.s32 %v105, 8
    %v107 = vstv %s103
    %vm108 = vcmp.lt.s32.totalorder %v105, %v107
    %vm109 = vcmp.lt.s32.totalorder %v106, %v107
    %v110 = vsel %vm108, %v100, 0.0
    %v111 = vsel %vm109, %v101, 0.0
    %v112 = vadd.f32 %v110, %v111
    %v113 = vrot.slane %v112, 4
    %v114 = vadd.f32 %v112, %v113
    %v115 = vrot.slane %v114, 2
    %v116 = vadd.f32 %v114, %v115
    %v117 = vrot.slane %v116, 1
    %v118 = vadd.f32 %v116, %v117
    %119 = vst [vmem:[#allocation8] sm:$0x1] %v118
    // Predicated region
    $region22: #{tpu_custom_call.1} parent=1 // pred_check
      _
    $region23: #{tpu_custom_call.1} parent=1 // pred_check_branch
      %121 = sbr.rel (0) target = $region25
    $region24: #{tpu_custom_call.1} parent=1 // pred_region
      %123 = vsyncadd [#allocation5], 0
      %s125 = sshll.u32 [#allocation8], 4
      %s126 = int_to_ptr.vmem [resolvable:$true] %s125
      %s127 = sshll.u32 %s3, 4
      %s128 = int_to_ptr.hbm [resolvable:$true] %s127
      %130 = dma.vmem_to_hbm [thread:$0]  %s126, 16, %s128, [#allocation5]
    $region25: #{tpu_custom_call.1} parent=1 // pred_fallthru
      _
    // Predicated region
    $region26: #{tpu_custom_call.1} parent=1 // pred_check
      _
    $region27: #{tpu_custom_call.1} parent=1 // pred_check_branch
      %132 = sbr.rel (0) target = $region29
    $region28: #{tpu_custom_call.1} parent=1 // pred_region
      %134 = dma.done [#allocation5], 16
    $region29: #{tpu_custom_call.1} parent=1 // pred_fallthru
      _
    %135 = vsyncpa [#allocation4], 1
    %136 = vsyncpa [#allocation7], 1
    %137 = vsyncpa [#allocation5], 1

</llo_original>
